<compile_context>
chip_gen: v7x
topology: tpu7x:2x2x1
jax: 0.10.0
libtpu: 0.0.40
codegen_flags: <defaults>
</compile_context>

<pallas_src>
import jax
import jax.numpy as jnp
import numpy as np
from jax.experimental import pallas as pl
from jax.experimental.pallas import tpu as pltpu


def _round_up(x, m):
    return ((x + m - 1) // m) * m


def _make_kernel(K, TL, tile_b, has_halo):
    """Kernel factory. Block views:
       x_ref:   (tile_b, C, TL)    main input tile (NCW, lanes = sequence)
       h_ref:   (tile_b, C, HALO)  forward halo tile (only when K > 1)
       wd_ref:  (K, C, 1)          depthwise weights (f32)
       wpw_ref: (C, C)             pointwise 1x1 weights (f32)
       be_ref:  (C, 1)             folded bias  w_pw @ b_dw + b_pw (f32)
       o_ref:   (tile_b, C, TL)    output tile, y-aligned (no trim needed)
    """

    def body(x_ref, h_ref, wd_ref, wpw_ref, be_ref, o_ref):
        wpw = wpw_ref[...]
        be = be_ref[...]
        wds = [wd_ref[k] for k in range(K)]            # each (C, 1), f32

        for b in range(tile_b):                        # static unroll, tile_b small
            xb = x_ref[b].astype(jnp.float32)          # (C, TL)
            if has_halo:
                hb = h_ref[b].astype(jnp.float32)      # (C, HALO)
                win = jnp.concatenate([xb, hb], axis=1)  # (C, TL + HALO)
            else:
                win = xb
            # Depthwise conv on the VPU: K per-channel FMAs against
            # lane-shifted windows (no im2col materialization, no K x MXU work).
            acc = wds[0] * win[:, 0:TL]
            for k in range(1, K):
                acc = acc + wds[k] * win[:, k:k + TL]
            # Single pointwise (C x C) matmul on the MXU, f32 accumulation.
            yb = jnp.dot(wpw, acc, preferred_element_type=jnp.float32) + be
            o_ref[b] = yb.astype(o_ref.dtype)

    if has_halo:
        def kernel(x_ref, h_ref, wd_ref, wpw_ref, be_ref, o_ref):
            body(x_ref, h_ref, wd_ref, wpw_ref, be_ref, o_ref)
    else:
        def kernel(x_ref, wd_ref, wpw_ref, be_ref, o_ref):
            body(x_ref, None, wd_ref, wpw_ref, be_ref, o_ref)
    return kernel


def depthwise1dconv(x_ncl, w_dw, b_dw, w_pw, b_pw, *, tile_l=1024, tile_b=None,
                    operand_dtype=jnp.float32, out_dtype=jnp.float32,
                    single_buffer_weights=True,
                    vmem_limit_bytes=64 * 1024 * 1024):
    """x_ncl: (B, C, L) (PyTorch NCW). Returns (B, C, L - K + 1) in out_dtype.

    operand_dtype=jnp.bfloat16 (and out_dtype=jnp.bfloat16) halves HBM traffic
    on v6e/v7x; the depthwise accumulation stays f32 (safe on v5e's VPU too).
    """
    B, C, L = x_ncl.shape
    K = w_dw.shape[-1]
    if w_dw.shape[:2] != (C, 1) or w_pw.shape[:2] != (C, C):
        raise ValueError("expected out_dim == in_dim (depthwise groups=in_dim, 1 filter/group)")
    L_out = L - K + 1
    if L_out <= 0:
        raise ValueError(f"sequence length {L} is shorter than kernel size {K}")

    has_halo = K > 1
    halo = _round_up(K - 1, 128) if has_halo else 0
    align = halo if has_halo else 128
    # Lane tile: multiple of `align` (>=128), capped by the rounded-up output length.
    tl = _round_up(min(max(tile_l, 128), _round_up(L_out, 128)), align)
    nt = pl.cdiv(L_out, tl)
    if tile_b is None:  # amortize per-grid-step overhead when C is small
        tile_b = 1 if C >= 64 else min(B, 8, max(1, 64 // max(C, 1)))
    tile_b = max(1, min(tile_b, B))
    nb = pl.cdiv(B, tile_b)
    halo_step = (tl // halo) if has_halo else 0
    n_halo_blocks = pl.cdiv(L, halo) if has_halo else 1

    x = x_ncl.astype(operand_dtype)                               # no padding pass
    wd = jnp.transpose(w_dw[:, 0, :].astype(jnp.float32), (1, 0))[:, :, None]  # (K,C,1)
    wpw = w_pw[:, :, 0].astype(jnp.float32)                       # (C, C)
    be = (wpw @ b_dw.astype(jnp.float32) + b_pw.astype(jnp.float32))[:, None]  # (C, 1)

    kernel = _make_kernel(K, tl, tile_b, has_halo)

    def build_call(single_buffer):
        w_kwargs = {"pipeline_mode": pl.Buffered(1)} if single_buffer else {}
        in_specs = [pl.BlockSpec((tile_b, C, tl), lambda bi, j: (bi, 0, j))]
        operands = [x]
        if has_halo:
            def halo_map(bi, j):
                # Forward halo: the `halo`-wide block right after this tile.
                # Clamped for the last tile (its OOB lanes only feed masked outputs).
                return (bi, 0, jnp.minimum((j + 1) * halo_step, n_halo_blocks - 1))
            in_specs.append(pl.BlockSpec((tile_b, C, halo), halo_map))
            operands.append(x)
        in_specs += [
            pl.BlockSpec((K, C, 1), lambda bi, j: (0, 0, 0), **w_kwargs),
            pl.BlockSpec((C, C), lambda bi, j: (0, 0), **w_kwargs),
            pl.BlockSpec((C, 1), lambda bi, j: (0, 0), **w_kwargs),
        ]
        operands += [wd, wpw, be]
        return pl.pallas_call(
            kernel,
            out_shape=jax.ShapeDtypeStruct((B, C, L_out), out_dtype),
            grid_spec=pltpu.PrefetchScalarGridSpec(
                num_scalar_prefetch=0,
                grid=(nb, nt),
                in_specs=in_specs,
                out_specs=pl.BlockSpec((tile_b, C, tl), lambda bi, j: (bi, 0, j)),
            ),
            compiler_params=pltpu.CompilerParams(
                dimension_semantics=("parallel", "parallel"),
                vmem_limit_bytes=vmem_limit_bytes),
        )(*operands)

    if single_buffer_weights:
        try:
            return jax.block_until_ready(build_call(True))
        except Exception:
            pass  # pl.Buffered(1) not supported here -> plain double-buffered specs
    return build_call(False)


def reference(x_ncl, w_dw, b_dw, w_pw, b_pw):
    """Pure-JAX reference mirroring PyTorch Conv1d(groups=in_dim) + Conv1d(1x1)."""
    B, C, L = x_ncl.shape
    K = w_dw.shape[-1]
    L_out = L - K + 1
    y = jnp.zeros((B, C, L_out), jnp.float32)
    for k in range(K):
        y = y + x_ncl[:, :, k:k + L_out] * w_dw[:, 0, k][None, :, None]
    y = y + b_dw[None, :, None]
    out = jnp.einsum("oc,bcl->bol", w_pw[:, :, 0], y) + b_pw[None, :, None]
    return out


def _make_inputs(key, B, C, L, K):
    k_x, k_wd, k_bd, k_wp, k_bp = jax.random.split(key, 5)
    factor = 0.05  # matches _init_weights(factor=0.05)
    x = jax.random.normal(k_x, (B, C, L), jnp.float32)
    w_dw = factor * jax.random.normal(k_wd, (C, 1, K), jnp.float32)
    b_dw = 0.01 * jax.random.normal(k_bd, (C,), jnp.float32)
    w_pw = factor * jax.random.normal(k_wp, (C, C, 1), jnp.float32)
    b_pw = 0.01 * jax.random.normal(k_bp, (C,), jnp.float32)
    return x, w_dw, b_dw, w_pw, b_pw


if __name__ == "__main__":
    key = jax.random.PRNGKey(0)
    k1, k2, k3 = jax.random.split(key, 3)

    # 1) Single L-tile, batched block (tile_b=2 by default for small C).
    B, C, L, K = 2, 8, 16, 4
    x, w_dw, b_dw, w_pw, b_pw = _make_inputs(k1, B, C, L, K)
    out = jax.block_until_ready(depthwise1dconv(x, w_dw, b_dw, w_pw, b_pw))
    ref = reference(x, w_dw, b_dw, w_pw, b_pw)
    np.testing.assert_allclose(np.asarray(out), np.asarray(ref), rtol=1e-4, atol=1e-5)

    # 2) Multiple L tiles + ragged last tile + clamped halo; per-batch grid steps.
    B2, C2, L2, K2 = 2, 8, 300, 4
    x2, w_dw2, b_dw2, w_pw2, b_pw2 = _make_inputs(k2, B2, C2, L2, K2)
    out2 = jax.block_until_ready(
        depthwise1dconv(x2, w_dw2, b_dw2, w_pw2, b_pw2, tile_l=128, tile_b=1))
    ref2 = reference(x2, w_dw2, b_dw2, w_pw2, b_pw2)
    np.testing.assert_allclose(np.asarray(out2), np.asarray(ref2), rtol=1e-4, atol=1e-5)

    # 3) bf16 storage path (v6e/v7x bandwidth optimization), f32 accumulation.
    out3 = jax.block_until_ready(
        depthwise1dconv(x2, w_dw2, b_dw2, w_pw2, b_pw2, tile_l=128,
                        operand_dtype=jnp.bfloat16, out_dtype=jnp.bfloat16))
    np.testing.assert_allclose(np.asarray(out3.astype(jnp.float32)), np.asarray(ref2),
                               rtol=5e-2, atol=5e-3)

    # 4) Degenerate-but-valid K=1 (pointwise-only depthwise) path.
    B4, C4, L4, K4 = 2, 8, 16, 1
    x4, w_dw4, b_dw4, w_pw4, b_pw4 = _make_inputs(k3, B4, C4, L4, K4)
    out4 = jax.block_until_ready(depthwise1dconv(x4, w_dw4, b_dw4, w_pw4, b_pw4))
    ref4 = reference(x4, w_dw4, b_dw4, w_pw4, b_pw4)
    np.testing.assert_allclose(np.asarray(out4), np.asarray(ref4), rtol=1e-4, atol=1e-5)

    print("KERNEL_OK")
</pallas_src>

<mosaic_0001>
module attributes {stable_mosaic.version = 11 : i64} {
  func.func @kernel(%arg0: i32, %arg1: i32, %arg2: memref<2x8x128xf32, #tpu.memory_space<vmem>>, %arg3: memref<2x8x128xf32, #tpu.memory_space<vmem>>, %arg4: memref<4x8x1xf32, #tpu.memory_space<vmem>>, %arg5: memref<8x8xf32, #tpu.memory_space<vmem>>, %arg6: memref<8x1xf32, #tpu.memory_space<vmem>>, %arg7: memref<2x8x128xf32, #tpu.memory_space<vmem>>) attributes {dimension_semantics = [#tpu.dimension_semantics<parallel>, #tpu.dimension_semantics<parallel>], iteration_bounds = array<i64: 1, 1>, scalar_prefetch = 0 : i64, scratch_operands = 0 : i64, tpu.core_type = #tpu.core_type<tc>, window_params = [{transform_indices = @transform_0, window_bounds = array<i64: 2, 8, 128>}, {transform_indices = @transform_1, window_bounds = array<i64: 2, 8, 128>}, {pipeline_mode = #tpu.pipeline_mode<synchronous>, transform_indices = @transform_2, window_bounds = array<i64: 4, 8, 1>}, {pipeline_mode = #tpu.pipeline_mode<synchronous>, transform_indices = @transform_3, window_bounds = array<i64: 8, 8>}, {pipeline_mode = #tpu.pipeline_mode<synchronous>, transform_indices = @transform_4, window_bounds = array<i64: 8, 1>}, {transform_indices = @transform_5, window_bounds = array<i64: 2, 8, 128>}]} {
    %c0 = arith.constant 0 : index
    %c0_0 = arith.constant 0 : index
    %0 = vector.load %arg5[%c0, %c0_0] : memref<8x8xf32, #tpu.memory_space<vmem>>, vector<8x8xf32>
    %c0_1 = arith.constant 0 : index
    %c0_2 = arith.constant 0 : index
    %1 = vector.load %arg6[%c0_1, %c0_2] : memref<8x1xf32, #tpu.memory_space<vmem>>, vector<8x1xf32>
    %c0_3 = arith.constant 0 : index
    %c0_4 = arith.constant 0 : index
    %c0_5 = arith.constant 0 : index
    %2 = vector.load %arg4[%c0_3, %c0_4, %c0_5] : memref<4x8x1xf32, #tpu.memory_space<vmem>>, vector<1x8x1xf32>
    %3 = vector.shape_cast %2 : vector<1x8x1xf32> to vector<8x1xf32>
    %c1 = arith.constant 1 : index
    %c0_6 = arith.constant 0 : index
    %c0_7 = arith.constant 0 : index
    %4 = vector.load %arg4[%c1, %c0_6, %c0_7] : memref<4x8x1xf32, #tpu.memory_space<vmem>>, vector<1x8x1xf32>
    %5 = vector.shape_cast %4 : vector<1x8x1xf32> to vector<8x1xf32>
    %c2 = arith.constant 2 : index
    %c0_8 = arith.constant 0 : index
    %c0_9 = arith.constant 0 : index
    %6 = vector.load %arg4[%c2, %c0_8, %c0_9] : memref<4x8x1xf32, #tpu.memory_space<vmem>>, vector<1x8x1xf32>
    %7 = vector.shape_cast %6 : vector<1x8x1xf32> to vector<8x1xf32>
    %c3 = arith.constant 3 : index
    %c0_10 = arith.constant 0 : index
    %c0_11 = arith.constant 0 : index
    %8 = vector.load %arg4[%c3, %c0_10, %c0_11] : memref<4x8x1xf32, #tpu.memory_space<vmem>>, vector<1x8x1xf32>
    %9 = vector.shape_cast %8 : vector<1x8x1xf32> to vector<8x1xf32>
    %c0_12 = arith.constant 0 : index
    %c0_13 = arith.constant 0 : index
    %c0_14 = arith.constant 0 : index
    %10 = vector.load %arg2[%c0_12, %c0_13, %c0_14] : memref<2x8x128xf32, #tpu.memory_space<vmem>>, vector<1x8x128xf32>
    %11 = vector.shape_cast %10 : vector<1x8x128xf32> to vector<8x128xf32>
    %c0_15 = arith.constant 0 : index
    %c0_16 = arith.constant 0 : index
    %c0_17 = arith.constant 0 : index
    %12 = vector.load %arg3[%c0_15, %c0_16, %c0_17] : memref<2x8x128xf32, #tpu.memory_space<vmem>>, vector<1x8x128xf32>
    %13 = vector.shape_cast %12 : vector<1x8x128xf32> to vector<8x128xf32>
    %14 = tpu.concatenate %11, %13 in 1 : vector<8x128xf32>, vector<8x128xf32> -> vector<8x256xf32>
    %15 = vector.extract_strided_slice %14 {offsets = [0, 0], sizes = [8, 128], strides = [1, 1]} : vector<8x256xf32> to vector<8x128xf32>
    %16 = vector.broadcast %3 : vector<8x1xf32> to vector<8x128xf32>
    %17 = arith.mulf %16, %15 : vector<8x128xf32>
    %18 = vector.extract_strided_slice %14 {offsets = [0, 1], sizes = [8, 128], strides = [1, 1]} : vector<8x256xf32> to vector<8x128xf32>
    %19 = vector.broadcast %5 : vector<8x1xf32> to vector<8x128xf32>
    %20 = arith.mulf %19, %18 : vector<8x128xf32>
    %21 = arith.addf %17, %20 : vector<8x128xf32>
    %22 = vector.extract_strided_slice %14 {offsets = [0, 2], sizes = [8, 128], strides = [1, 1]} : vector<8x256xf32> to vector<8x128xf32>
    %23 = vector.broadcast %7 : vector<8x1xf32> to vector<8x128xf32>
    %24 = arith.mulf %23, %22 : vector<8x128xf32>
    %25 = arith.addf %21, %24 : vector<8x128xf32>
    %26 = vector.extract_strided_slice %14 {offsets = [0, 3], sizes = [8, 128], strides = [1, 1]} : vector<8x256xf32> to vector<8x128xf32>
    %27 = vector.broadcast %9 : vector<8x1xf32> to vector<8x128xf32>
    %28 = arith.mulf %27, %26 : vector<8x128xf32>
    %29 = arith.addf %25, %28 : vector<8x128xf32>
    %cst = arith.constant dense<0.000000e+00> : vector<8x128xf32>
    %30 = tpu.matmul %0, %29, %cst {dimension_numbers = #tpu.dot_dimension_numbers<[1], [0], [0], [1], [0, 0, 1, 1], [], []>} : vector<8x8xf32>, vector<8x128xf32>, vector<8x128xf32> -> vector<8x128xf32>
    %31 = vector.broadcast %1 : vector<8x1xf32> to vector<8x128xf32>
    %32 = arith.addf %30, %31 : vector<8x128xf32>
    %c0_18 = arith.constant 0 : index
    %c0_19 = arith.constant 0 : index
    %c0_20 = arith.constant 0 : index
    %33 = vector.load %arg7[%c0_18, %c0_19, %c0_20] : memref<2x8x128xf32, #tpu.memory_space<vmem>>, vector<1x8x128xf32>
    %34 = vector.shape_cast %33 : vector<1x8x128xf32> to vector<8x128xf32>
    %35 = vector.shape_cast %32 : vector<8x128xf32> to vector<1x8x128xf32>
    tpu.vector_store %arg7[%c0_18, %c0_19, %c0_20], %35 {strides = array<i32>} : memref<2x8x128xf32, #tpu.memory_space<vmem>>, vector<1x8x128xf32>,
    %c1_21 = arith.constant 1 : index
    %c0_22 = arith.constant 0 : index
    %c0_23 = arith.constant 0 : index
    %36 = vector.load %arg2[%c1_21, %c0_22, %c0_23] : memref<2x8x128xf32, #tpu.memory_space<vmem>>, vector<1x8x128xf32>
    %37 = vector.shape_cast %36 : vector<1x8x128xf32> to vector<8x128xf32>
    %c1_24 = arith.constant 1 : index
    %c0_25 = arith.constant 0 : index
    %c0_26 = arith.constant 0 : index
    %38 = vector.load %arg3[%c1_24, %c0_25, %c0_26] : memref<2x8x128xf32, #tpu.memory_space<vmem>>, vector<1x8x128xf32>
    %39 = vector.shape_cast %38 : vector<1x8x128xf32> to vector<8x128xf32>
    %40 = tpu.concatenate %37, %39 in 1 : vector<8x128xf32>, vector<8x128xf32> -> vector<8x256xf32>
    %41 = vector.extract_strided_slice %40 {offsets = [0, 0], sizes = [8, 128], strides = [1, 1]} : vector<8x256xf32> to vector<8x128xf32>
    %42 = vector.broadcast %3 : vector<8x1xf32> to vector<8x128xf32>
    %43 = arith.mulf %42, %41 : vector<8x128xf32>
    %44 = vector.extract_strided_slice %40 {offsets = [0, 1], sizes = [8, 128], strides = [1, 1]} : vector<8x256xf32> to vector<8x128xf32>
    %45 = vector.broadcast %5 : vector<8x1xf32> to vector<8x128xf32>
    %46 = arith.mulf %45, %44 : vector<8x128xf32>
    %47 = arith.addf %43, %46 : vector<8x128xf32>
    %48 = vector.extract_strided_slice %40 {offsets = [0, 2], sizes = [8, 128], strides = [1, 1]} : vector<8x256xf32> to vector<8x128xf32>
    %49 = vector.broadcast %7 : vector<8x1xf32> to vector<8x128xf32>
    %50 = arith.mulf %49, %48 : vector<8x128xf32>
    %51 = arith.addf %47, %50 : vector<8x128xf32>
    %52 = vector.extract_strided_slice %40 {offsets = [0, 3], sizes = [8, 128], strides = [1, 1]} : vector<8x256xf32> to vector<8x128xf32>
    %53 = vector.broadcast %9 : vector<8x1xf32> to vector<8x128xf32>
    %54 = arith.mulf %53, %52 : vector<8x128xf32>
    %55 = arith.addf %51, %54 : vector<8x128xf32>
    %cst_27 = arith.constant dense<0.000000e+00> : vector<8x128xf32>
    %56 = tpu.matmul %0, %55, %cst_27 {dimension_numbers = #tpu.dot_dimension_numbers<[1], [0], [0], [1], [0, 0, 1, 1], [], []>} : vector<8x8xf32>, vector<8x128xf32>, vector<8x128xf32> -> vector<8x128xf32>
    %57 = vector.broadcast %1 : vector<8x1xf32> to vector<8x128xf32>
    %58 = arith.addf %56, %57 : vector<8x128xf32>
    %c1_28 = arith.constant 1 : index
    %c0_29 = arith.constant 0 : index
    %c0_30 = arith.constant 0 : index
    %59 = vector.load %arg7[%c1_28, %c0_29, %c0_30] : memref<2x8x128xf32, #tpu.memory_space<vmem>>, vector<1x8x128xf32>
    %60 = vector.shape_cast %59 : vector<1x8x128xf32> to vector<8x128xf32>
    %61 = vector.shape_cast %58 : vector<8x128xf32> to vector<1x8x128xf32>
    tpu.vector_store %arg7[%c1_28, %c0_29, %c0_30], %61 {strides = array<i32>} : memref<2x8x128xf32, #tpu.memory_space<vmem>>, vector<1x8x128xf32>,
    return
  }
  func.func @transform_0(%arg0: i32, %arg1: i32) -> (i32, i32, i32) {
    %c0_i32 = arith.constant 0 : i32
    %c0_i32_0 = arith.constant 0 : i32
    return %arg0, %c0_i32, %arg1 : i32, i32, i32
  }
  func.func @transform_1(%arg0: i32, %arg1: i32) -> (i32, i32, i32) {
    %c1_i32 = arith.constant 1 : i32
    %0 = arith.addi %arg1, %c1_i32 : i32
    %c1_i32_0 = arith.constant 1 : i32
    %1 = arith.muli %0, %c1_i32_0 : i32
    %c0_i32 = arith.constant 0 : i32
    %2 = arith.minsi %1, %c0_i32 : i32
    %c0_i32_1 = arith.constant 0 : i32
    %c0_i32_2 = arith.constant 0 : i32
    return %arg0, %c0_i32_1, %2 : i32, i32, i32
  }
  func.func @transform_2(%arg0: i32, %arg1: i32) -> (i32, i32, i32) {
    %c0_i32 = arith.constant 0 : i32
    %c0_i32_0 = arith.constant 0 : i32
    %c0_i32_1 = arith.constant 0 : i32
    %c0_i32_2 = arith.constant 0 : i32
    return %c0_i32, %c0_i32_0, %c0_i32_1 : i32, i32, i32
  }
  func.func @transform_3(%arg0: i32, %arg1: i32) -> (i32, i32) {
    %c0_i32 = arith.constant 0 : i32
    %c0_i32_0 = arith.constant 0 : i32
    %c0_i32_1 = arith.constant 0 : i32
    return %c0_i32, %c0_i32_0 : i32, i32
  }
  func.func @transform_4(%arg0: i32, %arg1: i32) -> (i32, i32) {
    %c0_i32 = arith.constant 0 : i32
    %c0_i32_0 = arith.constant 0 : i32
    %c0_i32_1 = arith.constant 0 : i32
    return %c0_i32, %c0_i32_0 : i32, i32
  }
  func.func @transform_5(%arg0: i32, %arg1: i32) -> (i32, i32, i32) {
    %c0_i32 = arith.constant 0 : i32
    %c0_i32_0 = arith.constant 0 : i32
    return %arg0, %c0_i32, %arg1 : i32, i32, i32
  }
}

module attributes {stable_mosaic.version = 11 : i64} {
  func.func @kernel(%arg0: i32, %arg1: i32, %arg2: memref<2x8x128xf32, #tpu.memory_space<vmem>>, %arg3: memref<2x8x128xf32, #tpu.memory_space<vmem>>, %arg4: memref<4x8x1xf32, #tpu.memory_space<vmem>>, %arg5: memref<8x8xf32, #tpu.memory_space<vmem>>, %arg6: memref<8x1xf32, #tpu.memory_space<vmem>>, %arg7: memref<2x8x128xf32, #tpu.memory_space<vmem>>) attributes {dimension_semantics = [#tpu.dimension_semantics<parallel>, #tpu.dimension_semantics<parallel>], iteration_bounds = array<i64: 1, 1>, scalar_prefetch = 0 : i64, scratch_operands = 0 : i64, tpu.core_type = #tpu.core_type<tc>, window_params = [{transform_indices = @transform_0, window_bounds = array<i64: 2, 8, 128>}, {transform_indices = @transform_1, window_bounds = array<i64: 2, 8, 128>}, {pipeline_mode = #tpu.pipeline_mode<synchronous>, transform_indices = @transform_2, window_bounds = array<i64: 4, 8, 1>}, {pipeline_mode = #tpu.pipeline_mode<synchronous>, transform_indices = @transform_3, window_bounds = array<i64: 8, 8>}, {pipeline_mode = #tpu.pipeline_mode<synchronous>, transform_indices = @transform_4, window_bounds = array<i64: 8, 1>}, {transform_indices = @transform_5, window_bounds = array<i64: 2, 8, 128>}]} {
    %c0 = arith.constant 0 : index
    %c0_0 = arith.constant 0 : index
    %0 = vector.load %arg5[%c0, %c0_0] : memref<8x8xf32, #tpu.memory_space<vmem>>, vector<8x8xf32>
    %c0_1 = arith.constant 0 : index
    %c0_2 = arith.constant 0 : index
    %1 = vector.load %arg6[%c0_1, %c0_2] : memref<8x1xf32, #tpu.memory_space<vmem>>, vector<8x1xf32>
    %c0_3 = arith.constant 0 : index
    %c0_4 = arith.constant 0 : index
    %c0_5 = arith.constant 0 : index
    %2 = vector.load %arg4[%c0_3, %c0_4, %c0_5] : memref<4x8x1xf32, #tpu.memory_space<vmem>>, vector<1x8x1xf32>
    %3 = vector.shape_cast %2 : vector<1x8x1xf32> to vector<8x1xf32>
    %c1 = arith.constant 1 : index
    %c0_6 = arith.constant 0 : index
    %c0_7 = arith.constant 0 : index
    %4 = vector.load %arg4[%c1, %c0_6, %c0_7] : memref<4x8x1xf32, #tpu.memory_space<vmem>>, vector<1x8x1xf32>
    %5 = vector.shape_cast %4 : vector<1x8x1xf32> to vector<8x1xf32>
    %c2 = arith.constant 2 : index
    %c0_8 = arith.constant 0 : index
    %c0_9 = arith.constant 0 : index
    %6 = vector.load %arg4[%c2, %c0_8, %c0_9] : memref<4x8x1xf32, #tpu.memory_space<vmem>>, vector<1x8x1xf32>
    %7 = vector.shape_cast %6 : vector<1x8x1xf32> to vector<8x1xf32>
    %c3 = arith.constant 3 : index
    %c0_10 = arith.constant 0 : index
    %c0_11 = arith.constant 0 : index
    %8 = vector.load %arg4[%c3, %c0_10, %c0_11] : memref<4x8x1xf32, #tpu.memory_space<vmem>>, vector<1x8x1xf32>
    %9 = vector.shape_cast %8 : vector<1x8x1xf32> to vector<8x1xf32>
    %c0_12 = arith.constant 0 : index
    %c0_13 = arith.constant 0 : index
    %c0_14 = arith.constant 0 : index
    %10 = vector.load %arg2[%c0_12, %c0_13, %c0_14] : memref<2x8x128xf32, #tpu.memory_space<vmem>>, vector<1x8x128xf32>
    %11 = vector.shape_cast %10 : vector<1x8x128xf32> to vector<8x128xf32>
    %c0_15 = arith.constant 0 : index
    %c0_16 = arith.constant 0 : index
    %c0_17 = arith.constant 0 : index
    %12 = vector.load %arg3[%c0_15, %c0_16, %c0_17] : memref<2x8x128xf32, #tpu.memory_space<vmem>>, vector<1x8x128xf32>
    %13 = vector.shape_cast %12 : vector<1x8x128xf32> to vector<8x128xf32>
    %14 = tpu.concatenate %11, %13 in 1 : vector<8x128xf32>, vector<8x128xf32> -> vector<8x256xf32>
    %15 = vector.extract_strided_slice %14 {offsets = [0, 0], sizes = [8, 128], strides = [1, 1]} : vector<8x256xf32> to vector<8x128xf32>
    %16 = vector.broadcast %3 : vector<8x1xf32> to vector<8x128xf32>
    %17 = arith.mulf %16, %15 : vector<8x128xf32>
    %18 = vector.extract_strided_slice %14 {offsets = [0, 1], sizes = [8, 128], strides = [1, 1]} : vector<8x256xf32> to vector<8x128xf32>
    %19 = vector.broadcast %5 : vector<8x1xf32> to vector<8x128xf32>
    %20 = arith.mulf %19, %18 : vector<8x128xf32>
    %21 = arith.addf %17, %20 : vector<8x128xf32>
    %22 = vector.extract_strided_slice %14 {offsets = [0, 2], sizes = [8, 128], strides = [1, 1]} : vector<8x256xf32> to vector<8x128xf32>
    %23 = vector.broadcast %7 : vector<8x1xf32> to vector<8x128xf32>
    %24 = arith.mulf %23, %22 : vector<8x128xf32>
    %25 = arith.addf %21, %24 : vector<8x128xf32>
    %26 = vector.extract_strided_slice %14 {offsets = [0, 3], sizes = [8, 128], strides = [1, 1]} : vector<8x256xf32> to vector<8x128xf32>
    %27 = vector.broadcast %9 : vector<8x1xf32> to vector<8x128xf32>
    %28 = arith.mulf %27, %26 : vector<8x128xf32>
    %29 = arith.addf %25, %28 : vector<8x128xf32>
    %cst = arith.constant dense<0.000000e+00> : vector<8x128xf32>
    %30 = tpu.matmul %0, %29, %cst {dimension_numbers = #tpu.dot_dimension_numbers<[1], [0], [0], [1], [0, 0, 1, 1], [], []>} : vector<8x8xf32>, vector<8x128xf32>, vector<8x128xf32> -> vector<8x128xf32>
    %31 = vector.broadcast %1 : vector<8x1xf32> to vector<8x128xf32>
    %32 = arith.addf %30, %31 : vector<8x128xf32>
    %c0_18 = arith.constant 0 : index
    %c0_19 = arith.constant 0 : index
    %c0_20 = arith.constant 0 : index
    %33 = vector.load %arg7[%c0_18, %c0_19, %c0_20] : memref<2x8x128xf32, #tpu.memory_space<vmem>>, vector<1x8x128xf32>
    %34 = vector.shape_cast %33 : vector<1x8x128xf32> to vector<8x128xf32>
    %35 = vector.shape_cast %32 : vector<8x128xf32> to vector<1x8x128xf32>
    tpu.vector_store %arg7[%c0_18, %c0_19, %c0_20], %35 {strides = array<i32>} : memref<2x8x128xf32, #tpu.memory_space<vmem>>, vector<1x8x128xf32>,
    %c1_21 = arith.constant 1 : index
    %c0_22 = arith.constant 0 : index
    %c0_23 = arith.constant 0 : index
    %36 = vector.load %arg2[%c1_21, %c0_22, %c0_23] : memref<2x8x128xf32, #tpu.memory_space<vmem>>, vector<1x8x128xf32>
    %37 = vector.shape_cast %36 : vector<1x8x128xf32> to vector<8x128xf32>
    %c1_24 = arith.constant 1 : index
    %c0_25 = arith.constant 0 : index
    %c0_26 = arith.constant 0 : index
    %38 = vector.load %arg3[%c1_24, %c0_25, %c0_26] : memref<2x8x128xf32, #tpu.memory_space<vmem>>, vector<1x8x128xf32>
    %39 = vector.shape_cast %38 : vector<1x8x128xf32> to vector<8x128xf32>
    %40 = tpu.concatenate %37, %39 in 1 : vector<8x128xf32>, vector<8x128xf32> -> vector<8x256xf32>
    %41 = vector.extract_strided_slice %40 {offsets = [0, 0], sizes = [8, 128], strides = [1, 1]} : vector<8x256xf32> to vector<8x128xf32>
    %42 = vector.broadcast %3 : vector<8x1xf32> to vector<8x128xf32>
    %43 = arith.mulf %42, %41 : vector<8x128xf32>
    %44 = vector.extract_strided_slice %40 {offsets = [0, 1], sizes = [8, 128], strides = [1, 1]} : vector<8x256xf32> to vector<8x128xf32>
    %45 = vector.broadcast %5 : vector<8x1xf32> to vector<8x128xf32>
    %46 = arith.mulf %45, %44 : vector<8x128xf32>
    %47 = arith.addf %43, %46 : vector<8x128xf32>
    %48 = vector.extract_strided_slice %40 {offsets = [0, 2], sizes = [8, 128], strides = [1, 1]} : vector<8x256xf32> to vector<8x128xf32>
    %49 = vector.broadcast %7 : vector<8x1xf32> to vector<8x128xf32>
    %50 = arith.mulf %49, %48 : vector<8x128xf32>
    %51 = arith.addf %47, %50 : vector<8x128xf32>
    %52 = vector.extract_strided_slice %40 {offsets = [0, 3], sizes = [8, 128], strides = [1, 1]} : vector<8x256xf32> to vector<8x128xf32>
    %53 = vector.broadcast %9 : vector<8x1xf32> to vector<8x128xf32>
    %54 = arith.mulf %53, %52 : vector<8x128xf32>
    %55 = arith.addf %51, %54 : vector<8x128xf32>
    %cst_27 = arith.constant dense<0.000000e+00> : vector<8x128xf32>
    %56 = tpu.matmul %0, %55, %cst_27 {dimension_numbers = #tpu.dot_dimension_numbers<[1], [0], [0], [1], [0, 0, 1, 1], [], []>} : vector<8x8xf32>, vector<8x128xf32>, vector<8x128xf32> -> vector<8x128xf32>
    %57 = vector.broadcast %1 : vector<8x1xf32> to vector<8x128xf32>
    %58 = arith.addf %56, %57 : vector<8x128xf32>
    %c1_28 = arith.constant 1 : index
    %c0_29 = arith.constant 0 : index
    %c0_30 = arith.constant 0 : index
    %59 = vector.load %arg7[%c1_28, %c0_29, %c0_30] : memref<2x8x128xf32, #tpu.memory_space<vmem>>, vector<1x8x128xf32>
    %60 = vector.shape_cast %59 : vector<1x8x128xf32> to vector<8x128xf32>
    %61 = vector.shape_cast %58 : vector<8x128xf32> to vector<1x8x128xf32>
    tpu.vector_store %arg7[%c1_28, %c0_29, %c0_30], %61 {strides = array<i32>} : memref<2x8x128xf32, #tpu.memory_space<vmem>>, vector<1x8x128xf32>,
    return
  }
  func.func @transform_0(%arg0: i32, %arg1: i32) -> (i32, i32, i32) {
    %c0_i32 = arith.constant 0 : i32
    %c0_i32_0 = arith.constant 0 : i32
    return %arg0, %c0_i32, %arg1 : i32, i32, i32
  }
  func.func @transform_1(%arg0: i32, %arg1: i32) -> (i32, i32, i32) {
    %c1_i32 = arith.constant 1 : i32
    %0 = arith.addi %arg1, %c1_i32 : i32
    %c1_i32_0 = arith.constant 1 : i32
    %1 = arith.muli %0, %c1_i32_0 : i32
    %c0_i32 = arith.constant 0 : i32
    %2 = arith.minsi %1, %c0_i32 : i32
    %c0_i32_1 = arith.constant 0 : i32
    %c0_i32_2 = arith.constant 0 : i32
    return %arg0, %c0_i32_1, %2 : i32, i32, i32
  }
  func.func @transform_2(%arg0: i32, %arg1: i32) -> (i32, i32, i32) {
    %c0_i32 = arith.constant 0 : i32
    %c0_i32_0 = arith.constant 0 : i32
    %c0_i32_1 = arith.constant 0 : i32
    %c0_i32_2 = arith.constant 0 : i32
    return %c0_i32, %c0_i32_0, %c0_i32_1 : i32, i32, i32
  }
  func.func @transform_3(%arg0: i32, %arg1: i32) -> (i32, i32) {
    %c0_i32 = arith.constant 0 : i32
    %c0_i32_0 = arith.constant 0 : i32
    %c0_i32_1 = arith.constant 0 : i32
    return %c0_i32, %c0_i32_0 : i32, i32
  }
  func.func @transform_4(%arg0: i32, %arg1: i32) -> (i32, i32) {
    %c0_i32 = arith.constant 0 : i32
    %c0_i32_0 = arith.constant 0 : i32
    %c0_i32_1 = arith.constant 0 : i32
    return %c0_i32, %c0_i32_0 : i32, i32
  }
  func.func @transform_5(%arg0: i32, %arg1: i32) -> (i32, i32, i32) {
    %c0_i32 = arith.constant 0 : i32
    %c0_i32_0 = arith.constant 0 : i32
    return %arg0, %c0_i32, %arg1 : i32, i32, i32
  }
}

</mosaic_0001>

<llo_original>
// kernel: tpu_custom_call.1
$region0: #{tpu_custom_call.1}
  #allocation0 [shape = 'u32[]', space=smem, size = 0x4, offset = 0x4, fixed_abs, tag = 'smem constant byte address 0x4 - core index']
  #allocation1 [shape = 'u32[144,128]{1,0:T(1,128)}', space=vmem, size = 0x12000, scoped, tag = 'internal scratch']
  %s0 = inlined_call_operand.hbm [shape: f32[2,8,16], index: 0, kind: input, shape index: {}]
  %s1 = inlined_call_operand.hbm [shape: f32[2,8,16], index: 1, kind: input, shape index: {}]
  %s2 = inlined_call_operand.hbm [shape: f32[4,8,1], index: 2, kind: input, shape index: {}]
  %s3 = inlined_call_operand.hbm [shape: f32[8,8], index: 3, kind: input, shape index: {}]
  %s4 = inlined_call_operand.hbm [shape: f32[8,1], index: 4, kind: input, shape index: {}]
  %s5 = inlined_call_operand.hbm [shape: f32[2,8,13], index: 5, kind: output, shape index: {}]
  %s6 = sld [smem:[#allocation0]]
  $region50: #{tpu_custom_call.1} parent=0
    _
  %s8 = ssub.s32 1, %s6
  %s9 = scalar_select 0, %s8, %s6
  $region1: #{tpu_custom_call.1} parent=0
    #allocation2 [shape = 'u8[8192]{0}', space=vmem, size = 0x2000, scoped, tag = 'input window, operand 0, single buffered']
    #allocation3 [shape = 's32[1]{0}', space=sflag, size = 0x4, scoped, tag = 'scoped memory for tpu_custom_call.1']
    #allocation4 [shape = 's32[1]{0}', space=sflag, size = 0x4, scoped, tag = 'scoped memory for tpu_custom_call.1']
    #allocation5 [shape = 'u8[8192]{0}', space=vmem, size = 0x2000, scoped, tag = 'input window, operand 1, single buffered']
    #allocation6 [shape = 's32[1]{0}', space=sflag, size = 0x4, scoped, tag = 'scoped memory for tpu_custom_call.1']
    #allocation7 [shape = 'u8[16384]{0}', space=vmem, size = 0x4000, scoped, tag = 'input window, operand 2, single buffered']
    #allocation8 [shape = 'u8[4096]{0}', space=vmem, size = 0x1000, scoped, tag = 'input window, operand 3, single buffered']
    #allocation9 [shape = 's32[1]{0}', space=sflag, size = 0x4, scoped, tag = 'scoped memory for tpu_custom_call.1']
    #allocation10 [shape = 'u8[4096]{0}', space=vmem, size = 0x1000, scoped, tag = 'input window, operand 4, single buffered']
    #allocation11 [shape = 'u8[8192]{0}', space=vmem, size = 0x2000, scoped, tag = 'output window, operand 0, single buffered']
    %10 = vsyncpa [#allocation3], 0
    %11 = vsyncpa [#allocation6], 0
    %12 = vsyncpa [#allocation9], 0
    %13 = vsyncpa [#allocation4], 0
    // Predicated region
    $region2: #{tpu_custom_call.1} parent=1 // pred_check
      _
    $region3: #{tpu_custom_call.1} parent=1 // pred_check_branch
      %15 = sbr.rel (0) target = $region5
    $region4: #{tpu_custom_call.1} parent=1 // pred_region
      %s17 = ssub.s32 256, 256
      %18 = vsyncadd [#allocation3], %s17
      %s19 = sshll.u32 [#allocation2], 4
      %s20 = int_to_ptr.vmem [resolvable:$true] %s19
      %25 = dma.hbm_to_vmem [thread:$0]  %s0, 256, %s20, [#allocation3], 128, 128, 8
    $region5: #{tpu_custom_call.1} parent=1 // pred_fallthru
      _
    // Predicated region
    $region6: #{tpu_custom_call.1} parent=1 // pred_check
      _
    $region7: #{tpu_custom_call.1} parent=1 // pred_check_branch
      %27 = sbr.rel (0) target = $region9
    $region8: #{tpu_custom_call.1} parent=1 // pred_region
      %s28 = sadd.s32 0, 1
      %p29 = scmp.lt.s32.totalorder %s28, 0
      %s30 = scalar_select %p29, %s28, 0
      %s32 = ssub.s32 256, 256
      %33 = vsyncadd [#allocation6], %s32
      %s34 = smul.addr %s30, 128
      %s35 = scalar_lea.hbm %s1, %s34
      %s36 = sshll.u32 [#allocation5], 4
      %s37 = int_to_ptr.vmem [resolvable:$true] %s36
      %42 = dma.hbm_to_vmem [thread:$0]  %s35, 256, %s37, [#allocation6], 128, 128, 8
    $region9: #{tpu_custom_call.1} parent=1 // pred_fallthru
      _
    // Predicated region
    $region10: #{tpu_custom_call.1} parent=1 // pred_check
      _
    $region11: #{tpu_custom_call.1} parent=1 // pred_check_branch
      %44 = sbr.rel (0) target = $region13
    $region12: #{tpu_custom_call.1} parent=1 // pred_region
      %s46 = ssub.s32 512, 512
      %47 = vsyncadd [#allocation6], %s46
      %s48 = sshll.u32 [#allocation7], 4
      %s49 = int_to_ptr.vmem [resolvable:$true] %s48
      %54 = dma.hbm_to_vmem [thread:$0]  %s2, 512, %s49, [#allocation6], 128, 128, 8
    $region13: #{tpu_custom_call.1} parent=1 // pred_fallthru
      _
    // Predicated region
    $region14: #{tpu_custom_call.1} parent=1 // pred_check
      _
    $region15: #{tpu_custom_call.1} parent=1 // pred_check_branch
      %56 = sbr.rel (0) target = $region17
    $region16: #{tpu_custom_call.1} parent=1 // pred_region
      %s58 = ssub.s32 128, 128
      %59 = vsyncadd [#allocation9], %s58
      %s61 = sshll.u32 [#allocation8], 4
      %s62 = int_to_ptr.vmem [resolvable:$true] %s61
      %64 = dma.hbm_to_vmem [thread:$0]  %s3, 128, %s62, [#allocation9]
    $region17: #{tpu_custom_call.1} parent=1 // pred_fallthru
      _
    // Predicated region
    $region18: #{tpu_custom_call.1} parent=1 // pred_check
      _
    $region19: #{tpu_custom_call.1} parent=1 // pred_check_branch
      %66 = sbr.rel (0) target = $region21
    $region20: #{tpu_custom_call.1} parent=1 // pred_region
      %s68 = ssub.s32 128, 128
      %69 = vsyncadd [#allocation9], %s68
      %s71 = sshll.u32 [#allocation10], 4
      %s72 = int_to_ptr.vmem [resolvable:$true] %s71
      %74 = dma.hbm_to_vmem [thread:$0]  %s4, 128, %s72, [#allocation9]
    $region21: #{tpu_custom_call.1} parent=1 // pred_fallthru
      _
    // Predicated region
    $region22: #{tpu_custom_call.1} parent=1 // pred_check
      _
    $region23: #{tpu_custom_call.1} parent=1 // pred_check_branch
      %76 = sbr.rel (0) target = $region25
    $region24: #{tpu_custom_call.1} parent=1 // pred_region
      %77 = dma.done [#allocation3], 256
    $region25: #{tpu_custom_call.1} parent=1 // pred_fallthru
      _
    // Predicated region
    $region26: #{tpu_custom_call.1} parent=1 // pred_check
      _
    $region27: #{tpu_custom_call.1} parent=1 // pred_check_branch
      %79 = sbr.rel (0) target = $region29
    $region28: #{tpu_custom_call.1} parent=1 // pred_region
      %80 = dma.done [#allocation6], 256
    $region29: #{tpu_custom_call.1} parent=1 // pred_fallthru
      _
    // Predicated region
    $region30: #{tpu_custom_call.1} parent=1 // pred_check
      _
    $region31: #{tpu_custom_call.1} parent=1 // pred_check_branch
      %82 = sbr.rel (0) target = $region33
    $region32: #{tpu_custom_call.1} parent=1 // pred_region
      %83 = dma.done [#allocation6], 512
    $region33: #{tpu_custom_call.1} parent=1 // pred_fallthru
      _
    // Predicated region
    $region34: #{tpu_custom_call.1} parent=1 // pred_check
      _
    $region35: #{tpu_custom_call.1} parent=1 // pred_check_branch
      %85 = sbr.rel (0) target = $region37
    $region36: #{tpu_custom_call.1} parent=1 // pred_region
      %86 = dma.done [#allocation9], 128
    $region37: #{tpu_custom_call.1} parent=1 // pred_fallthru
      _
    // Predicated region
    $region38: #{tpu_custom_call.1} parent=1 // pred_check
      _
    $region39: #{tpu_custom_call.1} parent=1 // pred_check_branch
      %88 = sbr.rel (0) target = $region41
    $region40: #{tpu_custom_call.1} parent=1 // pred_region
      %89 = dma.done [#allocation9], 128
    $region41: #{tpu_custom_call.1} parent=1 // pred_fallthru
      _
    %s90 = sadd.s32 0, 1
    %p91 = scmp.lt.s32.totalorder %s90, 0
    %s92 = scalar_select %p91, %s90, 0
    %v93 = vld [vmem:[#allocation8] sm:$0xff]
    %v94 = vld [vmem:[#allocation10] sm:$0xff]
    %v95 = vld [vmem:[#allocation7] sm:$0xff]
    %s96 = scalar_lea.vmem [#allocation7], 8
    %v97 = vld [vmem:[%s96] sm:$0xff]
    %s98 = scalar_lea.vmem [#allocation7], 16
    %v99 = vld [vmem:[%s98] sm:$0xff]
    %s100 = scalar_lea.vmem [#allocation7], 24
    %v101 = vld [vmem:[%s100] sm:$0xff]
    %v102 = vld [vmem:[#allocation2] sm:$0xff]
    %v103 = vld [vmem:[#allocation5] sm:$0xff]
    %105 = vset.pattern.permute.xlu0 0
    %106 = vperm.xlu0 %105, %v95
    %v107 = vpop.permute.xlu0 %106
    %v109 = vmul.f32 %v107, %v102
    %111 = vset.pattern.permute.xlu0 0
    %112 = vperm.xlu0 %111, %v97
    %v113 = vpop.permute.xlu0 %112
    %v115 = vmul.f32 %v113, %v102
    %v116 = vmul.f32 %v113, %v103
    %119 = vrot.lane.b32.xlu0 %v115, 127
    %v120 = vpop.permute.xlu0 %119
    %121 = vrot.lane.b32.xlu0 %v116, 127
    %v122 = vpop.permute.xlu0 %121
    %vm123 = vcmask 1039360
    %v124 = vsel %vm123, %v120, %v122
    %v126 = vadd.f32 %v109, %v124
    %128 = vset.pattern.permute.xlu0 0
    %129 = vperm.xlu0 %128, %v99
    %v130 = vpop.permute.xlu0 %129
    %v132 = vmul.f32 %v130, %v102
    %v133 = vmul.f32 %v130, %v103
    %136 = vrot.lane.b32.xlu0 %v132, 126
    %v137 = vpop.permute.xlu0 %136
    %138 = vrot.lane.b32.xlu0 %v133, 126
    %v139 = vpop.permute.xlu0 %138
    %vm140 = vcmask 1031168
    %v141 = vsel %vm140, %v137, %v139
    %v143 = vadd.f32 %v126, %v141
    %145 = vset.pattern.permute.xlu0 0
    %146 = vperm.xlu0 %145, %v101
    %v147 = vpop.permute.xlu0 %146
    %v149 = vmul.f32 %v147, %v102
    %v150 = vmul.f32 %v147, %v103
    %153 = vrot.lane.b32.xlu0 %v149, 125
    %v154 = vpop.permute.xlu0 %153
    %155 = vrot.lane.b32.xlu0 %v150, 125
    %v156 = vpop.permute.xlu0 %155
    %vm157 = vcmask 1022976
    %v158 = vsel %vm157, %v154, %v156
    %v160 = vadd.f32 %v143, %v158
    %162 = vset.pattern.permute.xlu0 0
    %163 = vperm.xlu0 %162, %v94
    %v164 = vpop.permute.xlu0 %163
    %vm166 = vcmask 64512
    %v168 = vsel %vm166, %v93, 0
    %170 = vmatprep.subr.mxu0 0.0
    %171 = vmatpush1.msra.mxu0 %v160
    %172 = vmatprep.subr.mxu0 0.0
    %173 = vmatpush1.msra.mxu0 0.0
    %174 = vmatprep.subr.mxu0 0.0
    %175 = vmatpush1.msra.mxu0 0.0
    %176 = vmatprep.subr.mxu0 0.0
    %177 = vmatpush1.msra.mxu0 0.0
    %178 = vmatprep.subr.mxu0 0.0
    %179 = vmatpush1.msra.mxu0 0.0
    %180 = vmatprep.subr.mxu0 0.0
    %181 = vmatpush1.msra.mxu0 0.0
    %182 = vmatprep.subr.mxu0 0.0
    %183 = vmatpush1.msra.mxu0 0.0
    %184 = vmatprep.subr.mxu0 0.0
    %185 = vmatpush1.msra.mxu0 0.0
    %186 = vmatprep.subr.mxu0 0.0
    %187 = vmatpush1.msra.mxu0 0.0
    %188 = vmatprep.subr.mxu0 0.0
    %189 = vmatpush1.msra.mxu0 0.0
    %190 = vmatprep.subr.mxu0 0.0
    %191 = vmatpush1.msra.mxu0 0.0
    %192 = vmatprep.subr.mxu0 0.0
    %193 = vmatpush1.msra.mxu0 0.0
    %194 = vmatprep.subr.mxu0 0.0
    %195 = vmatpush1.msra.mxu0 0.0
    %196 = vmatprep.subr.mxu0 0.0
    %197 = vmatpush1.msra.mxu0 0.0
    %198 = vmatprep.subr.mxu0 0.0
    %199 = vmatpush1.msra.mxu0 0.0
    %200 = vmatprep.subr.mxu0 0.0
    %201 = vmatpush1.msra.mxu0 0.0
    %202 = vmatprep.subr.mxu0 0.0
    %203 = vmatpush1.msra.mxu0 0.0
    %204 = vmatprep.subr.mxu0 0.0
    %205 = vmatpush1.msra.mxu0 0.0
    %206 = vmatprep.subr.mxu0 0.0
    %207 = vmatpush1.msra.mxu0 0.0
    %208 = vmatprep.subr.mxu0 0.0
    %209 = vmatpush1.msra.mxu0 0.0
    %210 = vmatprep.subr.mxu0 0.0
    %211 = vmatpush1.msra.mxu0 0.0
    %212 = vmatprep.subr.mxu0 0.0
    %213 = vmatpush1.msra.mxu0 0.0
    %214 = vmatprep.subr.mxu0 0.0
    %215 = vmatpush1.msra.mxu0 0.0
    %216 = vmatprep.subr.mxu0 0.0
    %217 = vmatpush1.msra.mxu0 0.0
    %218 = vmatprep.subr.mxu0 0.0
    %219 = vmatpush1.msra.mxu0 0.0
    %220 = vmatprep.subr.mxu0 0.0
    %221 = vmatpush1.msra.mxu0 0.0
    %222 = vmatprep.subr.mxu0 0.0
    %223 = vmatpush1.msra.mxu0 0.0
    %224 = vmatprep.subr.mxu0 0.0
    %225 = vmatpush1.msra.mxu0 0.0
    %226 = vmatprep.subr.mxu0 0.0
    %227 = vmatpush1.msra.mxu0 0.0
    %228 = vmatprep.subr.mxu0 0.0
    %229 = vmatpush1.msra.mxu0 0.0
    %230 = vmatprep.subr.mxu0 0.0
    %231 = vmatpush1.msra.mxu0 0.0
    %232 = vmatprep.subr.mxu0 0.0
    %233 = vmatpush1.msra.mxu0 0.0
    %234 = vmatprep.mubr.f32.mxu0 0.0
    %235 = vmatmul.mubr.f32.gmra.mrb[0].mxu0 %v168
    %v236 = vpop.f32.mrb[0].mxu0
    %v237 = vadd.f32 %v164, %v236
    %v238 = vpop.f32.mrb[0].mxu0
    %239 = vdwg.mxu0
    %240 = vst [vmem:[#allocation11] sm:$0xff] %v237
    %s241 = scalar_lea.vmem [#allocation2], 8
    %v242 = vld [vmem:[%s241] sm:$0xff]
    %s243 = scalar_lea.vmem [#allocation5], 8
    %v244 = vld [vmem:[%s243] sm:$0xff]
    %v245 = vmul.f32 %v107, %v242
    %v246 = vmul.f32 %v113, %v242
    %v247 = vmul.f32 %v113, %v244
    %250 = vrot.lane.b32.xlu0 %v246, 127
    %v251 = vpop.permute.xlu0 %250
    %252 = vrot.lane.b32.xlu0 %v247, 127
    %v253 = vpop.permute.xlu0 %252
    %v254 = vsel %vm123, %v251, %v253
    %v256 = vadd.f32 %v245, %v254
    %v257 = vmul.f32 %v130, %v242
    %v258 = vmul.f32 %v130, %v244
    %261 = vrot.lane.b32.xlu0 %v257, 126
    %v262 = vpop.permute.xlu0 %261
    %263 = vrot.lane.b32.xlu0 %v258, 126
    %v264 = vpop.permute.xlu0 %263
    %v265 = vsel %vm140, %v262, %v264
    %v267 = vadd.f32 %v256, %v265
    %v268 = vmul.f32 %v147, %v242
    %v269 = vmul.f32 %v147, %v244
    %272 = vrot.lane.b32.xlu0 %v268, 125
    %v273 = vpop.permute.xlu0 %272
    %274 = vrot.lane.b32.xlu0 %v269, 125
    %v275 = vpop.permute.xlu0 %274
    %v276 = vsel %vm157, %v273, %v275
    %v278 = vadd.f32 %v267, %v276
    %279 = vmatprep.subr.mxu0 0.0
    %280 = vmatpush1.msra.mxu0 %v278
    %281 = vmatprep.subr.mxu0 0.0
    %282 = vmatpush1.msra.mxu0 0.0
    %283 = vmatprep.subr.mxu0 0.0
    %284 = vmatpush1.msra.mxu0 0.0
    %285 = vmatprep.subr.mxu0 0.0
    %286 = vmatpush1.msra.mxu0 0.0
    %287 = vmatprep.subr.mxu0 0.0
    %288 = vmatpush1.msra.mxu0 0.0
    %289 = vmatprep.subr.mxu0 0.0
    %290 = vmatpush1.msra.mxu0 0.0
    %291 = vmatprep.subr.mxu0 0.0
    %292 = vmatpush1.msra.mxu0 0.0
    %293 = vmatprep.subr.mxu0 0.0
    %294 = vmatpush1.msra.mxu0 0.0
    %295 = vmatprep.subr.mxu0 0.0
    %296 = vmatpush1.msra.mxu0 0.0
    %297 = vmatprep.subr.mxu0 0.0
    %298 = vmatpush1.msra.mxu0 0.0
    %299 = vmatprep.subr.mxu0 0.0
    %300 = vmatpush1.msra.mxu0 0.0
    %301 = vmatprep.subr.mxu0 0.0
    %302 = vmatpush1.msra.mxu0 0.0
    %303 = vmatprep.subr.mxu0 0.0
    %304 = vmatpush1.msra.mxu0 0.0
    %305 = vmatprep.subr.mxu0 0.0
    %306 = vmatpush1.msra.mxu0 0.0
    %307 = vmatprep.subr.mxu0 0.0
    %308 = vmatpush1.msra.mxu0 0.0
    %309 = vmatprep.subr.mxu0 0.0
    %310 = vmatpush1.msra.mxu0 0.0
    %311 = vmatprep.subr.mxu0 0.0
    %312 = vmatpush1.msra.mxu0 0.0
    %313 = vmatprep.subr.mxu0 0.0
    %314 = vmatpush1.msra.mxu0 0.0
    %315 = vmatprep.subr.mxu0 0.0
    %316 = vmatpush1.msra.mxu0 0.0
    %317 = vmatprep.subr.mxu0 0.0
    %318 = vmatpush1.msra.mxu0 0.0
    %319 = vmatprep.subr.mxu0 0.0
    %320 = vmatpush1.msra.mxu0 0.0
    %321 = vmatprep.subr.mxu0 0.0
    %322 = vmatpush1.msra.mxu0 0.0
    %323 = vmatprep.subr.mxu0 0.0
    %324 = vmatpush1.msra.mxu0 0.0
    %325 = vmatprep.subr.mxu0 0.0
    %326 = vmatpush1.msra.mxu0 0.0
    %327 = vmatprep.subr.mxu0 0.0
    %328 = vmatpush1.msra.mxu0 0.0
    %329 = vmatprep.subr.mxu0 0.0
    %330 = vmatpush1.msra.mxu0 0.0
    %331 = vmatprep.subr.mxu0 0.0
    %332 = vmatpush1.msra.mxu0 0.0
    %333 = vmatprep.subr.mxu0 0.0
    %334 = vmatpush1.msra.mxu0 0.0
    %335 = vmatprep.subr.mxu0 0.0
    %336 = vmatpush1.msra.mxu0 0.0
    %337 = vmatprep.subr.mxu0 0.0
    %338 = vmatpush1.msra.mxu0 0.0
    %339 = vmatprep.subr.mxu0 0.0
    %340 = vmatpush1.msra.mxu0 0.0
    %341 = vmatprep.subr.mxu0 0.0
    %342 = vmatpush1.msra.mxu0 0.0
    %343 = vmatprep.mubr.f32.mxu0 0.0
    %344 = vmatmul.mubr.f32.gmra.mrb[0].mxu0 %v168
    %v345 = vpop.f32.mrb[0].mxu0
    %v346 = vadd.f32 %v164, %v345
    %v347 = vpop.f32.mrb[0].mxu0
    %348 = vdwg.mxu0
    %s349 = scalar_lea.vmem [#allocation11], 8
    %350 = vst [vmem:[%s349] sm:$0xff] %v346
    // Predicated region
    $region42: #{tpu_custom_call.1} parent=1 // pred_check
      _
    $region43: #{tpu_custom_call.1} parent=1 // pred_check_branch
      %352 = sbr.rel (0) target = $region45
    $region44: #{tpu_custom_call.1} parent=1 // pred_region
      %s354 = ssub.s32 256, 256
      %355 = vsyncadd [#allocation4], %s354
      %s356 = sshll.u32 [#allocation11], 4
      %s357 = int_to_ptr.vmem [resolvable:$true] %s356
      %362 = dma.vmem_to_hbm [thread:$0]  %s357, 256, %s5, [#allocation4], 128, 128, 8
    $region45: #{tpu_custom_call.1} parent=1 // pred_fallthru
      _
    // Predicated region
    $region46: #{tpu_custom_call.1} parent=1 // pred_check
      _
    $region47: #{tpu_custom_call.1} parent=1 // pred_check_branch
      %364 = sbr.rel (0) target = $region49
    $region48: #{tpu_custom_call.1} parent=1 // pred_region
      %365 = dma.done [#allocation4], 256
    $region49: #{tpu_custom_call.1} parent=1 // pred_fallthru
      _
    %366 = vsyncpa [#allocation3], 1
    %367 = vsyncpa [#allocation6], 1
    %368 = vsyncpa [#allocation9], 1
    %369 = vsyncpa [#allocation4], 1

// kernel: tpu_custom_call.1
$region0: #{tpu_custom_call.1}
  #allocation0 [shape = 'u32[]', space=smem, size = 0x4, offset = 0x4, fixed_abs, tag = 'smem constant byte address 0x4 - core index']
  #allocation1 [shape = 'u32[144,128]{1,0:T(1,128)}', space=vmem, size = 0x12000, scoped, tag = 'internal scratch']
  %s0 = inlined_call_operand.hbm [shape: f32[2,8,16], index: 0, kind: input, shape index: {}]
  %s1 = inlined_call_operand.hbm [shape: f32[2,8,16], index: 1, kind: input, shape index: {}]
  %s2 = inlined_call_operand.hbm [shape: f32[4,8,1], index: 2, kind: input, shape index: {}]
  %s3 = inlined_call_operand.hbm [shape: f32[8,8], index: 3, kind: input, shape index: {}]
  %s4 = inlined_call_operand.hbm [shape: f32[8,1], index: 4, kind: input, shape index: {}]
  %s5 = inlined_call_operand.hbm [shape: f32[2,8,13], index: 5, kind: output, shape index: {}]
  %s6 = sld [smem:[#allocation0]]
  $region50: #{tpu_custom_call.1} parent=0
    _
  %s8 = ssub.s32 1, %s6
  %s9 = scalar_select 0, %s8, %s6
  $region1: #{tpu_custom_call.1} parent=0
    #allocation2 [shape = 'u8[8192]{0}', space=vmem, size = 0x2000, scoped, tag = 'input window, operand 0, single buffered']
    #allocation3 [shape = 's32[1]{0}', space=sflag, size = 0x4, scoped, tag = 'scoped memory for tpu_custom_call.1']
    #allocation4 [shape = 's32[1]{0}', space=sflag, size = 0x4, scoped, tag = 'scoped memory for tpu_custom_call.1']
    #allocation5 [shape = 'u8[8192]{0}', space=vmem, size = 0x2000, scoped, tag = 'input window, operand 1, single buffered']
    #allocation6 [shape = 's32[1]{0}', space=sflag, size = 0x4, scoped, tag = 'scoped memory for tpu_custom_call.1']
    #allocation7 [shape = 'u8[16384]{0}', space=vmem, size = 0x4000, scoped, tag = 'input window, operand 2, single buffered']
    #allocation8 [shape = 'u8[4096]{0}', space=vmem, size = 0x1000, scoped, tag = 'input window, operand 3, single buffered']
    #allocation9 [shape = 's32[1]{0}', space=sflag, size = 0x4, scoped, tag = 'scoped memory for tpu_custom_call.1']
    #allocation10 [shape = 'u8[4096]{0}', space=vmem, size = 0x1000, scoped, tag = 'input window, operand 4, single buffered']
    #allocation11 [shape = 'u8[8192]{0}', space=vmem, size = 0x2000, scoped, tag = 'output window, operand 0, single buffered']
    %10 = vsyncpa [#allocation3], 0
    %11 = vsyncpa [#allocation6], 0
    %12 = vsyncpa [#allocation9], 0
    %13 = vsyncpa [#allocation4], 0
    // Predicated region
    $region2: #{tpu_custom_call.1} parent=1 // pred_check
      _
    $region3: #{tpu_custom_call.1} parent=1 // pred_check_branch
      %15 = sbr.rel (0) target = $region5
    $region4: #{tpu_custom_call.1} parent=1 // pred_region
      %s17 = ssub.s32 256, 256
      %18 = vsyncadd [#allocation3], %s17
      %s19 = sshll.u32 [#allocation2], 4
      %s20 = int_to_ptr.vmem [resolvable:$true] %s19
      %25 = dma.hbm_to_vmem [thread:$0]  %s0, 256, %s20, [#allocation3], 128, 128, 8
    $region5: #{tpu_custom_call.1} parent=1 // pred_fallthru
      _
    // Predicated region
    $region6: #{tpu_custom_call.1} parent=1 // pred_check
      _
    $region7: #{tpu_custom_call.1} parent=1 // pred_check_branch
      %27 = sbr.rel (0) target = $region9
    $region8: #{tpu_custom_call.1} parent=1 // pred_region
      %s28 = sadd.s32 0, 1
      %p29 = scmp.lt.s32.totalorder %s28, 0
      %s30 = scalar_select %p29, %s28, 0
      %s32 = ssub.s32 256, 256
      %33 = vsyncadd [#allocation6], %s32
      %s34 = smul.addr %s30, 128
      %s35 = scalar_lea.hbm %s1, %s34
      %s36 = sshll.u32 [#allocation5], 4
      %s37 = int_to_ptr.vmem [resolvable:$true] %s36
      %42 = dma.hbm_to_vmem [thread:$0]  %s35, 256, %s37, [#allocation6], 128, 128, 8
    $region9: #{tpu_custom_call.1} parent=1 // pred_fallthru
      _
    // Predicated region
    $region10: #{tpu_custom_call.1} parent=1 // pred_check
      _
    $region11: #{tpu_custom_call.1} parent=1 // pred_check_branch
      %44 = sbr.rel (0) target = $region13
    $region12: #{tpu_custom_call.1} parent=1 // pred_region
      %s46 = ssub.s32 512, 512
      %47 = vsyncadd [#allocation6], %s46
      %s48 = sshll.u32 [#allocation7], 4
      %s49 = int_to_ptr.vmem [resolvable:$true] %s48
      %54 = dma.hbm_to_vmem [thread:$0]  %s2, 512, %s49, [#allocation6], 128, 128, 8
    $region13: #{tpu_custom_call.1} parent=1 // pred_fallthru
      _
    // Predicated region
    $region14: #{tpu_custom_call.1} parent=1 // pred_check
      _
    $region15: #{tpu_custom_call.1} parent=1 // pred_check_branch
      %56 = sbr.rel (0) target = $region17
    $region16: #{tpu_custom_call.1} parent=1 // pred_region
      %s58 = ssub.s32 128, 128
      %59 = vsyncadd [#allocation9], %s58
      %s61 = sshll.u32 [#allocation8], 4
      %s62 = int_to_ptr.vmem [resolvable:$true] %s61
      %64 = dma.hbm_to_vmem [thread:$0]  %s3, 128, %s62, [#allocation9]
    $region17: #{tpu_custom_call.1} parent=1 // pred_fallthru
      _
    // Predicated region
    $region18: #{tpu_custom_call.1} parent=1 // pred_check
      _
    $region19: #{tpu_custom_call.1} parent=1 // pred_check_branch
      %66 = sbr.rel (0) target = $region21
    $region20: #{tpu_custom_call.1} parent=1 // pred_region
      %s68 = ssub.s32 128, 128
      %69 = vsyncadd [#allocation9], %s68
      %s71 = sshll.u32 [#allocation10], 4
      %s72 = int_to_ptr.vmem [resolvable:$true] %s71
      %74 = dma.hbm_to_vmem [thread:$0]  %s4, 128, %s72, [#allocation9]
    $region21: #{tpu_custom_call.1} parent=1 // pred_fallthru
      _
    // Predicated region
    $region22: #{tpu_custom_call.1} parent=1 // pred_check
      _
    $region23: #{tpu_custom_call.1} parent=1 // pred_check_branch
      %76 = sbr.rel (0) target = $region25
    $region24: #{tpu_custom_call.1} parent=1 // pred_region
      %77 = dma.done [#allocation3], 256
    $region25: #{tpu_custom_call.1} parent=1 // pred_fallthru
      _
    // Predicated region
    $region26: #{tpu_custom_call.1} parent=1 // pred_check
      _
    $region27: #{tpu_custom_call.1} parent=1 // pred_check_branch
      %79 = sbr.rel (0) target = $region29
    $region28: #{tpu_custom_call.1} parent=1 // pred_region
      %80 = dma.done [#allocation6], 256
    $region29: #{tpu_custom_call.1} parent=1 // pred_fallthru
      _
    // Predicated region
    $region30: #{tpu_custom_call.1} parent=1 // pred_check
      _
    $region31: #{tpu_custom_call.1} parent=1 // pred_check_branch
      %82 = sbr.rel (0) target = $region33
    $region32: #{tpu_custom_call.1} parent=1 // pred_region
      %83 = dma.done [#allocation6], 512
    $region33: #{tpu_custom_call.1} parent=1 // pred_fallthru
      _
    // Predicated region
    $region34: #{tpu_custom_call.1} parent=1 // pred_check
      _
    $region35: #{tpu_custom_call.1} parent=1 // pred_check_branch
      %85 = sbr.rel (0) target = $region37
    $region36: #{tpu_custom_call.1} parent=1 // pred_region
      %86 = dma.done [#allocation9], 128
    $region37: #{tpu_custom_call.1} parent=1 // pred_fallthru
      _
    // Predicated region
    $region38: #{tpu_custom_call.1} parent=1 // pred_check
      _
    $region39: #{tpu_custom_call.1} parent=1 // pred_check_branch
      %88 = sbr.rel (0) target = $region41
    $region40: #{tpu_custom_call.1} parent=1 // pred_region
      %89 = dma.done [#allocation9], 128
    $region41: #{tpu_custom_call.1} parent=1 // pred_fallthru
      _
    %s90 = sadd.s32 0, 1
    %p91 = scmp.lt.s32.totalorder %s90, 0
    %s92 = scalar_select %p91, %s90, 0
    %v93 = vld [vmem:[#allocation8] sm:$0xff]
    %v94 = vld [vmem:[#allocation10] sm:$0xff]
    %v95 = vld [vmem:[#allocation7] sm:$0xff]
    %s96 = scalar_lea.vmem [#allocation7], 8
    %v97 = vld [vmem:[%s96] sm:$0xff]
    %s98 = scalar_lea.vmem [#allocation7], 16
    %v99 = vld [vmem:[%s98] sm:$0xff]
    %s100 = scalar_lea.vmem [#allocation7], 24
    %v101 = vld [vmem:[%s100] sm:$0xff]
    %v102 = vld [vmem:[#allocation2] sm:$0xff]
    %v103 = vld [vmem:[#allocation5] sm:$0xff]
    %105 = vset.pattern.permute.xlu0 0
    %106 = vperm.xlu0 %105, %v95
    %v107 = vpop.permute.xlu0 %106
    %v109 = vmul.f32 %v107, %v102
    %111 = vset.pattern.permute.xlu0 0
    %112 = vperm.xlu0 %111, %v97
    %v113 = vpop.permute.xlu0 %112
    %v115 = vmul.f32 %v113, %v102
    %v116 = vmul.f32 %v113, %v103
    %119 = vrot.lane.b32.xlu0 %v115, 127
    %v120 = vpop.permute.xlu0 %119
    %121 = vrot.lane.b32.xlu0 %v116, 127
    %v122 = vpop.permute.xlu0 %121
    %vm123 = vcmask 1039360
    %v124 = vsel %vm123, %v120, %v122
    %v126 = vadd.f32 %v109, %v124
    %128 = vset.pattern.permute.xlu0 0
    %129 = vperm.xlu0 %128, %v99
    %v130 = vpop.permute.xlu0 %129
    %v132 = vmul.f32 %v130, %v102
    %v133 = vmul.f32 %v130, %v103
    %136 = vrot.lane.b32.xlu0 %v132, 126
    %v137 = vpop.permute.xlu0 %136
    %138 = vrot.lane.b32.xlu0 %v133, 126
    %v139 = vpop.permute.xlu0 %138
    %vm140 = vcmask 1031168
    %v141 = vsel %vm140, %v137, %v139
    %v143 = vadd.f32 %v126, %v141
    %145 = vset.pattern.permute.xlu0 0
    %146 = vperm.xlu0 %145, %v101
    %v147 = vpop.permute.xlu0 %146
    %v149 = vmul.f32 %v147, %v102
    %v150 = vmul.f32 %v147, %v103
    %153 = vrot.lane.b32.xlu0 %v149, 125
    %v154 = vpop.permute.xlu0 %153
    %155 = vrot.lane.b32.xlu0 %v150, 125
    %v156 = vpop.permute.xlu0 %155
    %vm157 = vcmask 1022976
    %v158 = vsel %vm157, %v154, %v156
    %v160 = vadd.f32 %v143, %v158
    %162 = vset.pattern.permute.xlu0 0
    %163 = vperm.xlu0 %162, %v94
    %v164 = vpop.permute.xlu0 %163
    %vm166 = vcmask 64512
    %v168 = vsel %vm166, %v93, 0
    %170 = vmatprep.subr.mxu0 0.0
    %171 = vmatpush1.msra.mxu0 %v160
    %172 = vmatprep.subr.mxu0 0.0
    %173 = vmatpush1.msra.mxu0 0.0
    %174 = vmatprep.subr.mxu0 0.0
    %175 = vmatpush1.msra.mxu0 0.0
    %176 = vmatprep.subr.mxu0 0.0
    %177 = vmatpush1.msra.mxu0 0.0
    %178 = vmatprep.subr.mxu0 0.0
    %179 = vmatpush1.msra.mxu0 0.0
    %180 = vmatprep.subr.mxu0 0.0
    %181 = vmatpush1.msra.mxu0 0.0
    %182 = vmatprep.subr.mxu0 0.0
    %183 = vmatpush1.msra.mxu0 0.0
    %184 = vmatprep.subr.mxu0 0.0
    %185 = vmatpush1.msra.mxu0 0.0
    %186 = vmatprep.subr.mxu0 0.0
    %187 = vmatpush1.msra.mxu0 0.0
    %188 = vmatprep.subr.mxu0 0.0
    %189 = vmatpush1.msra.mxu0 0.0
    %190 = vmatprep.subr.mxu0 0.0
    %191 = vmatpush1.msra.mxu0 0.0
    %192 = vmatprep.subr.mxu0 0.0
    %193 = vmatpush1.msra.mxu0 0.0
    %194 = vmatprep.subr.mxu0 0.0
    %195 = vmatpush1.msra.mxu0 0.0
    %196 = vmatprep.subr.mxu0 0.0
    %197 = vmatpush1.msra.mxu0 0.0
    %198 = vmatprep.subr.mxu0 0.0
    %199 = vmatpush1.msra.mxu0 0.0
    %200 = vmatprep.subr.mxu0 0.0
    %201 = vmatpush1.msra.mxu0 0.0
    %202 = vmatprep.subr.mxu0 0.0
    %203 = vmatpush1.msra.mxu0 0.0
    %204 = vmatprep.subr.mxu0 0.0
    %205 = vmatpush1.msra.mxu0 0.0
    %206 = vmatprep.subr.mxu0 0.0
    %207 = vmatpush1.msra.mxu0 0.0
    %208 = vmatprep.subr.mxu0 0.0
    %209 = vmatpush1.msra.mxu0 0.0
    %210 = vmatprep.subr.mxu0 0.0
    %211 = vmatpush1.msra.mxu0 0.0
    %212 = vmatprep.subr.mxu0 0.0
    %213 = vmatpush1.msra.mxu0 0.0
    %214 = vmatprep.subr.mxu0 0.0
    %215 = vmatpush1.msra.mxu0 0.0
    %216 = vmatprep.subr.mxu0 0.0
    %217 = vmatpush1.msra.mxu0 0.0
    %218 = vmatprep.subr.mxu0 0.0
    %219 = vmatpush1.msra.mxu0 0.0
    %220 = vmatprep.subr.mxu0 0.0
    %221 = vmatpush1.msra.mxu0 0.0
    %222 = vmatprep.subr.mxu0 0.0
    %223 = vmatpush1.msra.mxu0 0.0
    %224 = vmatprep.subr.mxu0 0.0
    %225 = vmatpush1.msra.mxu0 0.0
    %226 = vmatprep.subr.mxu0 0.0
    %227 = vmatpush1.msra.mxu0 0.0
    %228 = vmatprep.subr.mxu0 0.0
    %229 = vmatpush1.msra.mxu0 0.0
    %230 = vmatprep.subr.mxu0 0.0
    %231 = vmatpush1.msra.mxu0 0.0
    %232 = vmatprep.subr.mxu0 0.0
    %233 = vmatpush1.msra.mxu0 0.0
    %234 = vmatprep.mubr.f32.mxu0 0.0
    %235 = vmatmul.mubr.f32.gmra.mrb[0].mxu0 %v168
    %v236 = vpop.f32.mrb[0].mxu0
    %v237 = vadd.f32 %v164, %v236
    %v238 = vpop.f32.mrb[0].mxu0
    %239 = vdwg.mxu0
    %240 = vst [vmem:[#allocation11] sm:$0xff] %v237
    %s241 = scalar_lea.vmem [#allocation2], 8
    %v242 = vld [vmem:[%s241] sm:$0xff]
    %s243 = scalar_lea.vmem [#allocation5], 8
    %v244 = vld [vmem:[%s243] sm:$0xff]
    %v245 = vmul.f32 %v107, %v242
    %v246 = vmul.f32 %v113, %v242
    %v247 = vmul.f32 %v113, %v244
    %250 = vrot.lane.b32.xlu0 %v246, 127
    %v251 = vpop.permute.xlu0 %250
    %252 = vrot.lane.b32.xlu0 %v247, 127
    %v253 = vpop.permute.xlu0 %252
    %v254 = vsel %vm123, %v251, %v253
    %v256 = vadd.f32 %v245, %v254
    %v257 = vmul.f32 %v130, %v242
    %v258 = vmul.f32 %v130, %v244
    %261 = vrot.lane.b32.xlu0 %v257, 126
    %v262 = vpop.permute.xlu0 %261
    %263 = vrot.lane.b32.xlu0 %v258, 126
    %v264 = vpop.permute.xlu0 %263
    %v265 = vsel %vm140, %v262, %v264
    %v267 = vadd.f32 %v256, %v265
    %v268 = vmul.f32 %v147, %v242
    %v269 = vmul.f32 %v147, %v244
    %272 = vrot.lane.b32.xlu0 %v268, 125
    %v273 = vpop.permute.xlu0 %272
    %274 = vrot.lane.b32.xlu0 %v269, 125
    %v275 = vpop.permute.xlu0 %274
    %v276 = vsel %vm157, %v273, %v275
    %v278 = vadd.f32 %v267, %v276
    %279 = vmatprep.subr.mxu0 0.0
    %280 = vmatpush1.msra.mxu0 %v278
    %281 = vmatprep.subr.mxu0 0.0
    %282 = vmatpush1.msra.mxu0 0.0
    %283 = vmatprep.subr.mxu0 0.0
    %284 = vmatpush1.msra.mxu0 0.0
    %285 = vmatprep.subr.mxu0 0.0
    %286 = vmatpush1.msra.mxu0 0.0
    %287 = vmatprep.subr.mxu0 0.0
    %288 = vmatpush1.msra.mxu0 0.0
    %289 = vmatprep.subr.mxu0 0.0
    %290 = vmatpush1.msra.mxu0 0.0
    %291 = vmatprep.subr.mxu0 0.0
    %292 = vmatpush1.msra.mxu0 0.0
    %293 = vmatprep.subr.mxu0 0.0
    %294 = vmatpush1.msra.mxu0 0.0
    %295 = vmatprep.subr.mxu0 0.0
    %296 = vmatpush1.msra.mxu0 0.0
    %297 = vmatprep.subr.mxu0 0.0
    %298 = vmatpush1.msra.mxu0 0.0
    %299 = vmatprep.subr.mxu0 0.0
    %300 = vmatpush1.msra.mxu0 0.0
    %301 = vmatprep.subr.mxu0 0.0
    %302 = vmatpush1.msra.mxu0 0.0
    %303 = vmatprep.subr.mxu0 0.0
    %304 = vmatpush1.msra.mxu0 0.0
    %305 = vmatprep.subr.mxu0 0.0
    %306 = vmatpush1.msra.mxu0 0.0
    %307 = vmatprep.subr.mxu0 0.0
    %308 = vmatpush1.msra.mxu0 0.0
    %309 = vmatprep.subr.mxu0 0.0
    %310 = vmatpush1.msra.mxu0 0.0
    %311 = vmatprep.subr.mxu0 0.0
    %312 = vmatpush1.msra.mxu0 0.0
    %313 = vmatprep.subr.mxu0 0.0
    %314 = vmatpush1.msra.mxu0 0.0
    %315 = vmatprep.subr.mxu0 0.0
    %316 = vmatpush1.msra.mxu0 0.0
    %317 = vmatprep.subr.mxu0 0.0
    %318 = vmatpush1.msra.mxu0 0.0
    %319 = vmatprep.subr.mxu0 0.0
    %320 = vmatpush1.msra.mxu0 0.0
    %321 = vmatprep.subr.mxu0 0.0
    %322 = vmatpush1.msra.mxu0 0.0
    %323 = vmatprep.subr.mxu0 0.0
    %324 = vmatpush1.msra.mxu0 0.0
    %325 = vmatprep.subr.mxu0 0.0
    %326 = vmatpush1.msra.mxu0 0.0
    %327 = vmatprep.subr.mxu0 0.0
    %328 = vmatpush1.msra.mxu0 0.0
    %329 = vmatprep.subr.mxu0 0.0
    %330 = vmatpush1.msra.mxu0 0.0
    %331 = vmatprep.subr.mxu0 0.0
    %332 = vmatpush1.msra.mxu0 0.0
    %333 = vmatprep.subr.mxu0 0.0
    %334 = vmatpush1.msra.mxu0 0.0
    %335 = vmatprep.subr.mxu0 0.0
    %336 = vmatpush1.msra.mxu0 0.0
    %337 = vmatprep.subr.mxu0 0.0
    %338 = vmatpush1.msra.mxu0 0.0
    %339 = vmatprep.subr.mxu0 0.0
    %340 = vmatpush1.msra.mxu0 0.0
    %341 = vmatprep.subr.mxu0 0.0
    %342 = vmatpush1.msra.mxu0 0.0
    %343 = vmatprep.mubr.f32.mxu0 0.0
    %344 = vmatmul.mubr.f32.gmra.mrb[0].mxu0 %v168
    %v345 = vpop.f32.mrb[0].mxu0
    %v346 = vadd.f32 %v164, %v345
    %v347 = vpop.f32.mrb[0].mxu0
    %348 = vdwg.mxu0
    %s349 = scalar_lea.vmem [#allocation11], 8
    %350 = vst [vmem:[%s349] sm:$0xff] %v346
    // Predicated region
    $region42: #{tpu_custom_call.1} parent=1 // pred_check
      _
    $region43: #{tpu_custom_call.1} parent=1 // pred_check_branch
      %352 = sbr.rel (0) target = $region45
    $region44: #{tpu_custom_call.1} parent=1 // pred_region
      %s354 = ssub.s32 256, 256
      %355 = vsyncadd [#allocation4], %s354
      %s356 = sshll.u32 [#allocation11], 4
      %s357 = int_to_ptr.vmem [resolvable:$true] %s356
      %362 = dma.vmem_to_hbm [thread:$0]  %s357, 256, %s5, [#allocation4], 128, 128, 8
    $region45: #{tpu_custom_call.1} parent=1 // pred_fallthru
      _
    // Predicated region
    $region46: #{tpu_custom_call.1} parent=1 // pred_check
      _
    $region47: #{tpu_custom_call.1} parent=1 // pred_check_branch
      %364 = sbr.rel (0) target = $region49
    $region48: #{tpu_custom_call.1} parent=1 // pred_region
      %365 = dma.done [#allocation4], 256
    $region49: #{tpu_custom_call.1} parent=1 // pred_fallthru
      _
    %366 = vsyncpa [#allocation3], 1
    %367 = vsyncpa [#allocation6], 1
    %368 = vsyncpa [#allocation9], 1
    %369 = vsyncpa [#allocation4], 1

</llo_original>
